<compile_context>
chip_gen: v7x
topology: tpu7x:2x2x1
jax: 0.10.0
libtpu: 0.0.40
codegen_flags: <defaults>
</compile_context>

<pallas_src>
import jax
import jax.numpy as jnp
from jax import lax
from jax.experimental import pallas as pl
from jax.experimental.pallas import tpu as pltpu

# ---------------- model hyper-params (small, consistent with the module) ----
B = 2            # batch
T = 8            # sequence length
H = 32           # hid_dim
K = 3            # kernel_size
N_LAYERS = 4     # n_layers; dilation = 2**i
BT = B * T

# Per layer: taps (j, shift) that touch real data (shift < T).  Tap j of a
# dilation-d causal conv reads x shifted right in time by s = (K - 1 - j) * d;
# taps with s >= T only ever see zero padding and are pruned statically.
_LAYER_TAPS = []
for _l in range(N_LAYERS):
    _d = 2 ** _l
    _LAYER_TAPS.append(
        [(j, (K - 1 - j) * _d) for j in range(K) if (K - 1 - j) * _d < T])
# Distinct non-zero shifts across all layers ({1, 2, 4} here): one hoisted
# causal mask each, shared by every layer that uses that shift.
_LIVE_SHIFTS = sorted({s for taps in _LAYER_TAPS for (_j, s) in taps if s > 0})


def tcn_kernel(x_ref, w_ref, b_ref, out_ref):
    """Single invocation, whole problem resident in VMEM.

    Layout: channels on sublanes, batch*time on lanes (column index = b*T + t).

    x_ref  : (H, B*T)       f32   activations
    w_ref  : (L, K, H, H)   bf16  per-layer, per-tap weights W[l, j] = (C_out, C_in)
    b_ref  : (L, H, 1)      f32   per-layer conv bias (per channel)
    out_ref: (H, B)         f32   last-timestep output per batch element
    """
    x = x_ref[...]                                            # f32 (H, BT)

    # Hoisted causal masks: (col % T) >= s zeroes the causal-pad region and
    # stops roll wrap-around from leaking across batch boundaries.
    tcol = lax.broadcasted_iota(jnp.int32, (H, BT), 1) % T
    masks = {s: tcol >= s for s in _LIVE_SHIFTS}

    # Per-layer biases loaded once, before the layer loop.
    biases = [b_ref[l] for l in range(N_LAYERS)]              # each (H, 1) f32

    for l in range(N_LAYERS):                                 # statically unrolled
        # Per-tap MXU matmuls accumulated in one f32 accumulator: one
        # roll+select per live tap, no lane-concat relayout.  On v7x the extra
        # matmul pushes accumulate in place (MRB); ~neutral on v5e/v6e.
        acc = None
        for (j, s) in _LAYER_TAPS[l]:
            if s == 0:
                xs = x
            else:
                xs = jnp.where(masks[s], pltpu.roll(x, shift=s, axis=1), 0.0)
            p = jnp.dot(w_ref[l, j], xs.astype(jnp.bfloat16),
                        preferred_element_type=jnp.float32)   # (H, BT) f32
            acc = p if acc is None else acc + p
        out = jnp.maximum(acc + biases[l], 0.0)               # ReLU(conv); dropout == identity
        if l == 0:
            x = jnp.maximum(out + x, 0.0)                     # relu(out + res(x))
        else:
            x = out + x                                       # both operands already >= 0

    # Last timestep of each batch segment lives in column (b + 1) * T - 1.
    # B(=2) static single-lane stores; the wrapper restores (B, H) orientation.
    for b in range(B):
        out_ref[:, b:b + 1] = x[:, (b + 1) * T - 1:(b + 1) * T]


def temporal_tcn(x, w_taps, b_stack):
    """x: (B, T, H) f32 -> (B, H) f32  (TemporalTCN forward: y[:, :, -1])."""
    # (B, T, H) -> (H, B*T): channels on sublanes, batch*time on lanes.
    x_hbt = jnp.transpose(x, (2, 0, 1)).reshape(H, BT)
    out_hb = pl.pallas_call(
        tcn_kernel,
        out_shape=jax.ShapeDtypeStruct((H, B), jnp.float32),
        in_specs=[
            pl.BlockSpec(memory_space=pltpu.MemorySpace.VMEM),   # x      (H, BT)
            pl.BlockSpec(memory_space=pltpu.MemorySpace.VMEM),   # w_taps (L, K, H, H)
            pl.BlockSpec(memory_space=pltpu.MemorySpace.VMEM),   # bias   (L, H, 1)
        ],
        out_specs=pl.BlockSpec(memory_space=pltpu.MemorySpace.VMEM),
    )(x_hbt, w_taps, b_stack)
    return out_hb.T                                           # (B, H)


# ---------------- pure-JAX reference (for correctness check) ----------------
def ref_forward(x, w_taps_bf16, b_stack):
    """Mirrors the module: per-tap causal conv + bias, relu, relu(out + x)."""
    h = x.astype(jnp.float32)                                 # (B, T, H)
    for l in range(N_LAYERS):
        d = 2 ** l
        acc = jnp.zeros_like(h) + b_stack[l, :, 0]
        for j in range(K):
            s = (K - 1 - j) * d
            if s >= T:
                continue
            shifted = jnp.pad(h, ((0, 0), (s, 0), (0, 0)))[:, :T, :]
            acc = acc + jnp.einsum("bti,oi->bto",
                                   shifted.astype(jnp.bfloat16),
                                   w_taps_bf16[l, j],
                                   preferred_element_type=jnp.float32)
        out = jnp.maximum(acc, 0.0)
        h = jnp.maximum(out + h, 0.0)
    return h[:, -1, :]


if __name__ == "__main__":
    key = jax.random.PRNGKey(0)
    kx, kw, kb = jax.random.split(key, 3)

    # torch Conv1d weight is (C_out, C_in, k); its per-tap slices W[:, :, j]
    # are already (C_out, C_in) -- exactly the orientation needed for the
    # (H, B*T) layout -- so only a tap-major transpose is required:
    # (L, C_out, C_in, K) -> (L, K, C_out, C_in).  Stored bf16 (MXU-native on
    # v6e/v7x, halves weight DMA).
    w_torch = 0.1 * jax.random.normal(kw, (N_LAYERS, H, H, K), jnp.float32)
    w_taps = jnp.transpose(w_torch, (0, 3, 1, 2)).astype(jnp.bfloat16)  # (L,K,Cout,Cin)
    b_stack = 0.1 * jax.random.normal(kb, (N_LAYERS, H, 1), jnp.float32)

    x = jax.random.normal(kx, (B, T, H), jnp.float32)         # (batch, seq, hid)

    y = temporal_tcn(x, w_taps, b_stack)
    y = jax.block_until_ready(y)

    # NOTE: the reference matches the kernel's bf16-at-the-matmul convention,
    # so this validates the kernel; expect ~1e-2-level deviation vs a pure-f32
    # PyTorch Conv1d.
    y_ref = ref_forward(x, w_taps, b_stack)
    assert y.shape == (B, H)
    assert jnp.allclose(y, y_ref, atol=1e-2, rtol=1e-2), "mismatch vs reference"

    print("KERNEL_OK")
</pallas_src>

<mosaic_0001>
module attributes {stable_mosaic.version = 11 : i64} {
  func.func @tcn_kernel(%arg0: memref<32x16xf32, #tpu.memory_space<vmem>>, %arg1: memref<4x3x32x32xbf16, #tpu.memory_space<vmem>>, %arg2: memref<4x32x1xf32, #tpu.memory_space<vmem>>, %arg3: memref<32x2xf32, #tpu.memory_space<vmem>>) attributes {dimension_semantics = [], scalar_prefetch = 0 : i64, scratch_operands = 0 : i64, tpu.core_type = #tpu.core_type<tc>} {
    %c0 = arith.constant 0 : index
    %c0_0 = arith.constant 0 : index
    %0 = vector.load %arg0[%c0, %c0_0] : memref<32x16xf32, #tpu.memory_space<vmem>>, vector<32x16xf32>
    %1 = tpu.iota {dimensions = array<i32: 1>} : vector<32x16xi32>
    %c8_i32 = arith.constant 8 : i32
    %c0_i32 = arith.constant 0 : i32
    %2 = arith.cmpi eq, %c8_i32, %c0_i32 : i32
    %c1_i32 = arith.constant 1 : i32
    %3 = arith.select %2, %c1_i32, %c8_i32 : i32
    %4 = vector.broadcast %3 : i32 to vector<32x16xi32>
    %5 = arith.remsi %1, %4 : vector<32x16xi32>
    %c0_i32_1 = arith.constant 0 : i32
    %6 = vector.broadcast %c0_i32_1 : i32 to vector<32x16xi32>
    %7 = arith.cmpi ne, %5, %6 : vector<32x16xi32>
    %c0_i32_2 = arith.constant 0 : i32
    %8 = vector.broadcast %c0_i32_2 : i32 to vector<32x16xi32>
    %9 = arith.cmpi slt, %5, %8 : vector<32x16xi32>
    %c0_i32_3 = arith.constant 0 : i32
    %10 = arith.cmpi slt, %3, %c0_i32_3 : i32
    %11 = vector.broadcast %10 : i1 to vector<32x16xi1>
    %12 = vector.broadcast %11 : vector<32x16xi1> to vector<32x16xi1>
    %13 = arith.xori %9, %12 : vector<32x16xi1>
    %14 = arith.andi %13, %7 : vector<32x16xi1>
    %15 = vector.broadcast %3 : i32 to vector<32x16xi32>
    %16 = arith.addi %5, %15 : vector<32x16xi32>
    %17 = arith.select %14, %16, %5 : vector<32x16xi1>, vector<32x16xi32>
    %c1_i32_4 = arith.constant 1 : i32
    %18 = vector.broadcast %c1_i32_4 : i32 to vector<32x16xi32>
    %19 = arith.cmpi sge, %17, %18 : vector<32x16xi32>
    %c2_i32 = arith.constant 2 : i32
    %20 = vector.broadcast %c2_i32 : i32 to vector<32x16xi32>
    %21 = arith.cmpi sge, %17, %20 : vector<32x16xi32>
    %c4_i32 = arith.constant 4 : i32
    %22 = vector.broadcast %c4_i32 : i32 to vector<32x16xi32>
    %23 = arith.cmpi sge, %17, %22 : vector<32x16xi32>
    %c0_5 = arith.constant 0 : index
    %c0_6 = arith.constant 0 : index
    %c0_7 = arith.constant 0 : index
    %24 = vector.load %arg2[%c0_5, %c0_6, %c0_7] : memref<4x32x1xf32, #tpu.memory_space<vmem>>, vector<1x32x1xf32>
    %25 = vector.shape_cast %24 : vector<1x32x1xf32> to vector<32x1xf32>
    %c1 = arith.constant 1 : index
    %c0_8 = arith.constant 0 : index
    %c0_9 = arith.constant 0 : index
    %26 = vector.load %arg2[%c1, %c0_8, %c0_9] : memref<4x32x1xf32, #tpu.memory_space<vmem>>, vector<1x32x1xf32>
    %27 = vector.shape_cast %26 : vector<1x32x1xf32> to vector<32x1xf32>
    %c2 = arith.constant 2 : index
    %c0_10 = arith.constant 0 : index
    %c0_11 = arith.constant 0 : index
    %28 = vector.load %arg2[%c2, %c0_10, %c0_11] : memref<4x32x1xf32, #tpu.memory_space<vmem>>, vector<1x32x1xf32>
    %29 = vector.shape_cast %28 : vector<1x32x1xf32> to vector<32x1xf32>
    %c3 = arith.constant 3 : index
    %c0_12 = arith.constant 0 : index
    %c0_13 = arith.constant 0 : index
    %30 = vector.load %arg2[%c3, %c0_12, %c0_13] : memref<4x32x1xf32, #tpu.memory_space<vmem>>, vector<1x32x1xf32>
    %31 = vector.shape_cast %30 : vector<1x32x1xf32> to vector<32x1xf32>
    %c2_i32_14 = arith.constant 2 : i32
    %32 = tpu.dynamic_rotate %0 by %c2_i32_14 dim 1 : vector<32x16xf32>, i32 -> vector<32x16xf32>
    %cst = arith.constant 0.000000e+00 : f32
    %33 = vector.broadcast %cst : f32 to vector<32x16xf32>
    %34 = arith.select %21, %32, %33 : vector<32x16xi1>, vector<32x16xf32>
    %c0_15 = arith.constant 0 : index
    %c0_16 = arith.constant 0 : index
    %c0_17 = arith.constant 0 : index
    %c0_18 = arith.constant 0 : index
    %35 = vector.load %arg1[%c0_15, %c0_16, %c0_17, %c0_18] : memref<4x3x32x32xbf16, #tpu.memory_space<vmem>>, vector<1x1x32x32xbf16>
    %36 = vector.shape_cast %35 : vector<1x1x32x32xbf16> to vector<32x32xbf16>
    %37 = arith.truncf %34 : vector<32x16xf32> to vector<32x16xbf16>
    %cst_19 = arith.constant dense<0.000000e+00> : vector<32x16xf32>
    %38 = tpu.matmul %36, %37, %cst_19 {dimension_numbers = #tpu.dot_dimension_numbers<[1], [0], [0], [1], [0, 0, 1, 1], [], []>} : vector<32x32xbf16>, vector<32x16xbf16>, vector<32x16xf32> -> vector<32x16xf32>
    %c1_i32_20 = arith.constant 1 : i32
    %39 = tpu.dynamic_rotate %0 by %c1_i32_20 dim 1 : vector<32x16xf32>, i32 -> vector<32x16xf32>
    %cst_21 = arith.constant 0.000000e+00 : f32
    %40 = vector.broadcast %cst_21 : f32 to vector<32x16xf32>
    %41 = arith.select %19, %39, %40 : vector<32x16xi1>, vector<32x16xf32>
    %c0_22 = arith.constant 0 : index
    %c1_23 = arith.constant 1 : index
    %c0_24 = arith.constant 0 : index
    %c0_25 = arith.constant 0 : index
    %42 = vector.load %arg1[%c0_22, %c1_23, %c0_24, %c0_25] : memref<4x3x32x32xbf16, #tpu.memory_space<vmem>>, vector<1x1x32x32xbf16>
    %43 = vector.shape_cast %42 : vector<1x1x32x32xbf16> to vector<32x32xbf16>
    %44 = arith.truncf %41 : vector<32x16xf32> to vector<32x16xbf16>
    %cst_26 = arith.constant dense<0.000000e+00> : vector<32x16xf32>
    %45 = tpu.matmul %43, %44, %cst_26 {dimension_numbers = #tpu.dot_dimension_numbers<[1], [0], [0], [1], [0, 0, 1, 1], [], []>} : vector<32x32xbf16>, vector<32x16xbf16>, vector<32x16xf32> -> vector<32x16xf32>
    %46 = arith.addf %38, %45 : vector<32x16xf32>
    %c0_27 = arith.constant 0 : index
    %c2_28 = arith.constant 2 : index
    %c0_29 = arith.constant 0 : index
    %c0_30 = arith.constant 0 : index
    %47 = vector.load %arg1[%c0_27, %c2_28, %c0_29, %c0_30] : memref<4x3x32x32xbf16, #tpu.memory_space<vmem>>, vector<1x1x32x32xbf16>
    %48 = vector.shape_cast %47 : vector<1x1x32x32xbf16> to vector<32x32xbf16>
    %49 = arith.truncf %0 : vector<32x16xf32> to vector<32x16xbf16>
    %cst_31 = arith.constant dense<0.000000e+00> : vector<32x16xf32>
    %50 = tpu.matmul %48, %49, %cst_31 {dimension_numbers = #tpu.dot_dimension_numbers<[1], [0], [0], [1], [0, 0, 1, 1], [], []>} : vector<32x32xbf16>, vector<32x16xbf16>, vector<32x16xf32> -> vector<32x16xf32>
    %51 = arith.addf %46, %50 : vector<32x16xf32>
    %52 = vector.broadcast %25 : vector<32x1xf32> to vector<32x16xf32>
    %53 = arith.addf %51, %52 : vector<32x16xf32>
    %cst_32 = arith.constant 0.000000e+00 : f32
    %54 = vector.broadcast %cst_32 : f32 to vector<32x16xf32>
    %55 = arith.maximumf %53, %54 : vector<32x16xf32>
    %56 = arith.addf %55, %0 : vector<32x16xf32>
    %cst_33 = arith.constant 0.000000e+00 : f32
    %57 = vector.broadcast %cst_33 : f32 to vector<32x16xf32>
    %58 = arith.maximumf %56, %57 : vector<32x16xf32>
    %c4_i32_34 = arith.constant 4 : i32
    %59 = tpu.dynamic_rotate %58 by %c4_i32_34 dim 1 : vector<32x16xf32>, i32 -> vector<32x16xf32>
    %cst_35 = arith.constant 0.000000e+00 : f32
    %60 = vector.broadcast %cst_35 : f32 to vector<32x16xf32>
    %61 = arith.select %23, %59, %60 : vector<32x16xi1>, vector<32x16xf32>
    %c1_36 = arith.constant 1 : index
    %c0_37 = arith.constant 0 : index
    %c0_38 = arith.constant 0 : index
    %c0_39 = arith.constant 0 : index
    %62 = vector.load %arg1[%c1_36, %c0_37, %c0_38, %c0_39] : memref<4x3x32x32xbf16, #tpu.memory_space<vmem>>, vector<1x1x32x32xbf16>
    %63 = vector.shape_cast %62 : vector<1x1x32x32xbf16> to vector<32x32xbf16>
    %64 = arith.truncf %61 : vector<32x16xf32> to vector<32x16xbf16>
    %cst_40 = arith.constant dense<0.000000e+00> : vector<32x16xf32>
    %65 = tpu.matmul %63, %64, %cst_40 {dimension_numbers = #tpu.dot_dimension_numbers<[1], [0], [0], [1], [0, 0, 1, 1], [], []>} : vector<32x32xbf16>, vector<32x16xbf16>, vector<32x16xf32> -> vector<32x16xf32>
    %c2_i32_41 = arith.constant 2 : i32
    %66 = tpu.dynamic_rotate %58 by %c2_i32_41 dim 1 : vector<32x16xf32>, i32 -> vector<32x16xf32>
    %cst_42 = arith.constant 0.000000e+00 : f32
    %67 = vector.broadcast %cst_42 : f32 to vector<32x16xf32>
    %68 = arith.select %21, %66, %67 : vector<32x16xi1>, vector<32x16xf32>
    %c1_43 = arith.constant 1 : index
    %c1_44 = arith.constant 1 : index
    %c0_45 = arith.constant 0 : index
    %c0_46 = arith.constant 0 : index
    %69 = vector.load %arg1[%c1_43, %c1_44, %c0_45, %c0_46] : memref<4x3x32x32xbf16, #tpu.memory_space<vmem>>, vector<1x1x32x32xbf16>
    %70 = vector.shape_cast %69 : vector<1x1x32x32xbf16> to vector<32x32xbf16>
    %71 = arith.truncf %68 : vector<32x16xf32> to vector<32x16xbf16>
    %cst_47 = arith.constant dense<0.000000e+00> : vector<32x16xf32>
    %72 = tpu.matmul %70, %71, %cst_47 {dimension_numbers = #tpu.dot_dimension_numbers<[1], [0], [0], [1], [0, 0, 1, 1], [], []>} : vector<32x32xbf16>, vector<32x16xbf16>, vector<32x16xf32> -> vector<32x16xf32>
    %73 = arith.addf %65, %72 : vector<32x16xf32>
    %c1_48 = arith.constant 1 : index
    %c2_49 = arith.constant 2 : index
    %c0_50 = arith.constant 0 : index
    %c0_51 = arith.constant 0 : index
    %74 = vector.load %arg1[%c1_48, %c2_49, %c0_50, %c0_51] : memref<4x3x32x32xbf16, #tpu.memory_space<vmem>>, vector<1x1x32x32xbf16>
    %75 = vector.shape_cast %74 : vector<1x1x32x32xbf16> to vector<32x32xbf16>
    %76 = arith.truncf %58 : vector<32x16xf32> to vector<32x16xbf16>
    %cst_52 = arith.constant dense<0.000000e+00> : vector<32x16xf32>
    %77 = tpu.matmul %75, %76, %cst_52 {dimension_numbers = #tpu.dot_dimension_numbers<[1], [0], [0], [1], [0, 0, 1, 1], [], []>} : vector<32x32xbf16>, vector<32x16xbf16>, vector<32x16xf32> -> vector<32x16xf32>
    %78 = arith.addf %73, %77 : vector<32x16xf32>
    %79 = vector.broadcast %27 : vector<32x1xf32> to vector<32x16xf32>
    %80 = arith.addf %78, %79 : vector<32x16xf32>
    %cst_53 = arith.constant 0.000000e+00 : f32
    %81 = vector.broadcast %cst_53 : f32 to vector<32x16xf32>
    %82 = arith.maximumf %80, %81 : vector<32x16xf32>
    %83 = arith.addf %82, %58 : vector<32x16xf32>
    %c4_i32_54 = arith.constant 4 : i32
    %84 = tpu.dynamic_rotate %83 by %c4_i32_54 dim 1 : vector<32x16xf32>, i32 -> vector<32x16xf32>
    %cst_55 = arith.constant 0.000000e+00 : f32
    %85 = vector.broadcast %cst_55 : f32 to vector<32x16xf32>
    %86 = arith.select %23, %84, %85 : vector<32x16xi1>, vector<32x16xf32>
    %c2_56 = arith.constant 2 : index
    %c1_57 = arith.constant 1 : index
    %c0_58 = arith.constant 0 : index
    %c0_59 = arith.constant 0 : index
    %87 = vector.load %arg1[%c2_56, %c1_57, %c0_58, %c0_59] : memref<4x3x32x32xbf16, #tpu.memory_space<vmem>>, vector<1x1x32x32xbf16>
    %88 = vector.shape_cast %87 : vector<1x1x32x32xbf16> to vector<32x32xbf16>
    %89 = arith.truncf %86 : vector<32x16xf32> to vector<32x16xbf16>
    %cst_60 = arith.constant dense<0.000000e+00> : vector<32x16xf32>
    %90 = tpu.matmul %88, %89, %cst_60 {dimension_numbers = #tpu.dot_dimension_numbers<[1], [0], [0], [1], [0, 0, 1, 1], [], []>} : vector<32x32xbf16>, vector<32x16xbf16>, vector<32x16xf32> -> vector<32x16xf32>
    %c2_61 = arith.constant 2 : index
    %c2_62 = arith.constant 2 : index
    %c0_63 = arith.constant 0 : index
    %c0_64 = arith.constant 0 : index
    %91 = vector.load %arg1[%c2_61, %c2_62, %c0_63, %c0_64] : memref<4x3x32x32xbf16, #tpu.memory_space<vmem>>, vector<1x1x32x32xbf16>
    %92 = vector.shape_cast %91 : vector<1x1x32x32xbf16> to vector<32x32xbf16>
    %93 = arith.truncf %83 : vector<32x16xf32> to vector<32x16xbf16>
    %cst_65 = arith.constant dense<0.000000e+00> : vector<32x16xf32>
    %94 = tpu.matmul %92, %93, %cst_65 {dimension_numbers = #tpu.dot_dimension_numbers<[1], [0], [0], [1], [0, 0, 1, 1], [], []>} : vector<32x32xbf16>, vector<32x16xbf16>, vector<32x16xf32> -> vector<32x16xf32>
    %95 = arith.addf %90, %94 : vector<32x16xf32>
    %96 = vector.broadcast %29 : vector<32x1xf32> to vector<32x16xf32>
    %97 = arith.addf %95, %96 : vector<32x16xf32>
    %cst_66 = arith.constant 0.000000e+00 : f32
    %98 = vector.broadcast %cst_66 : f32 to vector<32x16xf32>
    %99 = arith.maximumf %97, %98 : vector<32x16xf32>
    %100 = arith.addf %99, %83 : vector<32x16xf32>
    %c3_67 = arith.constant 3 : index
    %c2_68 = arith.constant 2 : index
    %c0_69 = arith.constant 0 : index
    %c0_70 = arith.constant 0 : index
    %101 = vector.load %arg1[%c3_67, %c2_68, %c0_69, %c0_70] : memref<4x3x32x32xbf16, #tpu.memory_space<vmem>>, vector<1x1x32x32xbf16>
    %102 = vector.shape_cast %101 : vector<1x1x32x32xbf16> to vector<32x32xbf16>
    %103 = arith.truncf %100 : vector<32x16xf32> to vector<32x16xbf16>
    %cst_71 = arith.constant dense<0.000000e+00> : vector<32x16xf32>
    %104 = tpu.matmul %102, %103, %cst_71 {dimension_numbers = #tpu.dot_dimension_numbers<[1], [0], [0], [1], [0, 0, 1, 1], [], []>} : vector<32x32xbf16>, vector<32x16xbf16>, vector<32x16xf32> -> vector<32x16xf32>
    %105 = vector.broadcast %31 : vector<32x1xf32> to vector<32x16xf32>
    %106 = arith.addf %104, %105 : vector<32x16xf32>
    %cst_72 = arith.constant 0.000000e+00 : f32
    %107 = vector.broadcast %cst_72 : f32 to vector<32x16xf32>
    %108 = arith.maximumf %106, %107 : vector<32x16xf32>
    %109 = arith.addf %108, %100 : vector<32x16xf32>
    %110 = vector.extract_strided_slice %109 {offsets = [0, 7], sizes = [32, 1], strides = [1, 1]} : vector<32x16xf32> to vector<32x1xf32>
    %c0_73 = arith.constant 0 : index
    %c0_74 = arith.constant 0 : index
    %111 = vector.load %arg3[%c0_73, %c0_74] : memref<32x2xf32, #tpu.memory_space<vmem>>, vector<32x1xf32>
    tpu.vector_store %arg3[%c0_73, %c0_74], %110 {strides = array<i32>} : memref<32x2xf32, #tpu.memory_space<vmem>>, vector<32x1xf32>,
    %112 = vector.extract_strided_slice %109 {offsets = [0, 15], sizes = [32, 1], strides = [1, 1]} : vector<32x16xf32> to vector<32x1xf32>
    %c0_75 = arith.constant 0 : index
    %c1_76 = arith.constant 1 : index
    %113 = vector.load %arg3[%c0_75, %c1_76] : memref<32x2xf32, #tpu.memory_space<vmem>>, vector<32x1xf32>
    tpu.vector_store %arg3[%c0_75, %c1_76], %112 {strides = array<i32>} : memref<32x2xf32, #tpu.memory_space<vmem>>, vector<32x1xf32>,
    return
  }
}

</mosaic_0001>

<llo_original>
// kernel: tpu_custom_call.1
$region0: #{tpu_custom_call.1}
  #allocation0 [shape = 'u32[]', space=smem, size = 0x4, offset = 0x4, fixed_abs, tag = 'smem constant byte address 0x4 - core index']
  #allocation1 [shape = 'u32[144,128]{1,0:T(1,128)}', space=vmem, size = 0x12000, scoped, tag = 'internal scratch']
  %s0 = inlined_call_operand.vmem [shape: f32[32,16], index: 0, kind: input, shape index: {}]
  %s1 = inlined_call_operand.hbm [shape: bf16[4,3,32,32], index: 1, kind: input, shape index: {}]
  %s2 = inlined_call_operand.vmem [shape: f32[4,32,1], index: 2, kind: input, shape index: {}]
  %s3 = inlined_call_operand.vmem [shape: f32[32,2], index: 3, kind: output, shape index: {}]
  %s4 = sld [smem:[#allocation0]]
  $region26: #{tpu_custom_call.1} parent=0
    _
  %s6 = ssub.s32 1, %s4
  %s7 = scalar_select 0, %s6, %s4
  $region1: #{tpu_custom_call.1} parent=0
    #allocation2 [shape = 'u8[98304]{0}', space=vmem, size = 0x18000, scoped, tag = 'input window, operand 1, single buffered']
    #allocation3 [shape = 's32[1]{0}', space=sflag, size = 0x4, scoped, tag = 'scoped memory for tpu_custom_call.1']
    %8 = vsyncpa [#allocation3], 0
    // Predicated region
    $region2: #{tpu_custom_call.1} parent=1 // pred_check
      _
    $region3: #{tpu_custom_call.1} parent=1 // pred_check_branch
      %10 = sbr.rel (0) target = $region5
    $region4: #{tpu_custom_call.1} parent=1 // pred_region
      _
    $region5: #{tpu_custom_call.1} parent=1 // pred_fallthru
      _
    // Predicated region
    $region6: #{tpu_custom_call.1} parent=1 // pred_check
      _
    $region7: #{tpu_custom_call.1} parent=1 // pred_check_branch
      %12 = sbr.rel (0) target = $region9
    $region8: #{tpu_custom_call.1} parent=1 // pred_region
      %s14 = ssub.s32 3072, 3072
      %15 = vsyncadd [#allocation3], %s14
      %s16 = sshll.u32 [#allocation2], 4
      %s17 = int_to_ptr.vmem [resolvable:$true] %s16
      %22 = dma.hbm_to_vmem [thread:$0]  %s1, 3072, %s17, [#allocation3], 64, 64, 4
    $region9: #{tpu_custom_call.1} parent=1 // pred_fallthru
      _
    // Predicated region
    $region10: #{tpu_custom_call.1} parent=1 // pred_check
      _
    $region11: #{tpu_custom_call.1} parent=1 // pred_check_branch
      %24 = sbr.rel (0) target = $region13
    $region12: #{tpu_custom_call.1} parent=1 // pred_region
      _
    $region13: #{tpu_custom_call.1} parent=1 // pred_fallthru
      _
    // Predicated region
    $region14: #{tpu_custom_call.1} parent=1 // pred_check
      _
    $region15: #{tpu_custom_call.1} parent=1 // pred_check_branch
      %26 = sbr.rel (0) target = $region17
    $region16: #{tpu_custom_call.1} parent=1 // pred_region
      %27 = dma.done [#allocation3], 3072
    $region17: #{tpu_custom_call.1} parent=1 // pred_fallthru
      _
    %v29 = vld [vmem:[%s0] sm:$0xff]
    %v30 = vld [vmem:[%s0 + $0x8] sm:$0xff]
    %v31 = vld [vmem:[%s0 + $0x10] sm:$0xff]
    %v32 = vld [vmem:[%s0 + $0x18] sm:$0xff]
    %v33 = vlaneseq
    %v34 = vand.u32 %v33, 127
    %vm35 = vcmp.lt.s32.totalorder %v34, 0
    %v36 = vsub.s32 0, %v34
    %v37 = vsel %vm35, %v36, %v34
    %v38 = vshrl.u32 %v37, 3
    %v39 = vand.u32 %v37, 7
    %v40 = vsub.s32 0, %v39
    %v41 = vsel %vm35, %v40, %v39
    %vm42 = vcmp.ne.s32.totalorder %v41, 0
    %vm43 = vcmp.lt.s32.totalorder %v41, 0
    %vm44 = vmand %vm43, %vm42
    %v45 = vadd.s32 %v41, 8
    %v46 = vsel %vm44, %v45, %v41
    %vm47 = vcmp.ge.s32.totalorder %v46, 1
    %vm48 = vcmp.ge.s32.totalorder %v46, 2
    %vm49 = vcmp.ge.s32.totalorder %v46, 4
    %v50 = vld [vmem:[%s2] sm:$0xff]
    %v51 = vld [vmem:[%s2 + $0x8] sm:$0xff]
    %v52 = vld [vmem:[%s2 + $0x10] sm:$0xff]
    %v53 = vld [vmem:[%s2 + $0x18] sm:$0xff]
    %s54 = scalar_lea.vmem %s2, 32
    %v55 = vld [vmem:[%s54] sm:$0xff]
    %v56 = vld [vmem:[%s54 + $0x8] sm:$0xff]
    %v57 = vld [vmem:[%s54 + $0x10] sm:$0xff]
    %v58 = vld [vmem:[%s54 + $0x18] sm:$0xff]
    %s59 = scalar_lea.vmem %s2, 64
    %v60 = vld [vmem:[%s59] sm:$0xff]
    %v61 = vld [vmem:[%s59 + $0x8] sm:$0xff]
    %v62 = vld [vmem:[%s59 + $0x10] sm:$0xff]
    %v63 = vld [vmem:[%s59 + $0x18] sm:$0xff]
    %s64 = scalar_lea.vmem %s2, 96
    %v65 = vld [vmem:[%s64] sm:$0xff]
    %v66 = vld [vmem:[%s64 + $0x8] sm:$0xff]
    %v67 = vld [vmem:[%s64 + $0x10] sm:$0xff]
    %v68 = vld [vmem:[%s64 + $0x18] sm:$0xff]
    %vm69 = vcmask 1047680
    %70 = vrot.lane.b32.xlu0 %v29, 16
    %v71 = vpop.permute.xlu0 %70
    %v72 = vsel %vm69, %v71, %v29
    %73 = vrot.lane.b32.xlu0 %v30, 16
    %v74 = vpop.permute.xlu0 %73
    %v75 = vsel %vm69, %v74, %v30
    %76 = vrot.lane.b32.xlu0 %v31, 16
    %v77 = vpop.permute.xlu0 %76
    %v78 = vsel %vm69, %v77, %v31
    %79 = vrot.lane.b32.xlu0 %v32, 16
    %v80 = vpop.permute.xlu0 %79
    %v81 = vsel %vm69, %v80, %v32
    %82 = vrot.lane.b32.xlu0 %v72, 16
    %v83 = vpop.permute.xlu0 %82
    %84 = vrot.lane.b32.xlu0 %v75, 16
    %v85 = vpop.permute.xlu0 %84
    %86 = vrot.lane.b32.xlu0 %v78, 16
    %v87 = vpop.permute.xlu0 %86
    %88 = vrot.lane.b32.xlu0 %v81, 16
    %v89 = vpop.permute.xlu0 %88
    %v90 = vsel %vm69, %v83, %v29
    %v91 = vsel %vm69, %v85, %v30
    %v92 = vsel %vm69, %v87, %v31
    %v93 = vsel %vm69, %v89, %v32
    %98 = vrot.lane.b32.xlu0 %v90, 114
    %v99 = vpop.permute.xlu0 %98
    %100 = vrot.lane.b32.xlu0 %v91, 114
    %v101 = vpop.permute.xlu0 %100
    %102 = vrot.lane.b32.xlu0 %v92, 114
    %v103 = vpop.permute.xlu0 %102
    %104 = vrot.lane.b32.xlu0 %v93, 114
    %v105 = vpop.permute.xlu0 %104
    %v110 = vsel %vm48, %v99, 0.0
    %v111 = vsel %vm48, %v101, 0.0
    %v112 = vsel %vm48, %v103, 0.0
    %v113 = vsel %vm48, %v105, 0.0
    %v114 = vld [vmem:[#allocation2] sm:$0xf]
    %v115 = vld [vmem:[#allocation2 + $0x4] sm:$0xf]
    %v116 = vld [vmem:[#allocation2 + $0x8] sm:$0xf]
    %v117 = vld [vmem:[#allocation2 + $0xc] sm:$0xf]
    %v118 = vpack.c.bf16 %v111, %v110
    %v119 = vpack.c.bf16 %v113, %v112
    %120 = vrot.lane.b32.xlu0 %v90, 113
    %v121 = vpop.permute.xlu0 %120
    %122 = vrot.lane.b32.xlu0 %v91, 113
    %v123 = vpop.permute.xlu0 %122
    %124 = vrot.lane.b32.xlu0 %v92, 113
    %v125 = vpop.permute.xlu0 %124
    %126 = vrot.lane.b32.xlu0 %v93, 113
    %v127 = vpop.permute.xlu0 %126
    %v132 = vsel %vm47, %v121, 0.0
    %v133 = vsel %vm47, %v123, 0.0
    %v134 = vsel %vm47, %v125, 0.0
    %v135 = vsel %vm47, %v127, 0.0
    %s136 = scalar_lea.vmem [#allocation2], 16
    %v137 = vld [vmem:[%s136] sm:$0xf]
    %v138 = vld [vmem:[%s136 + $0x4] sm:$0xf]
    %v139 = vld [vmem:[%s136 + $0x8] sm:$0xf]
    %v140 = vld [vmem:[%s136 + $0xc] sm:$0xf]
    %v141 = vpack.c.bf16 %v133, %v132
    %v142 = vpack.c.bf16 %v135, %v134
    %v147 = vunpack.c.l.b16 %v137
    %v148 = vunpack.c.l.b16 %v138
    %v149 = vunpack.c.l.b16 %v139
    %v150 = vunpack.c.l.b16 %v140
    %v151 = vpack.c.b16 %v148, %v147
    %v152 = vpack.c.b16 %v150, %v149
    %vm153 = vcmask 261120
    %v155 = vsel %vm153, %v151, 0
    %v158 = vsel %vm153, %v152, 0
    %160 = vmatprep.subr.bf16.mxu0 0
    %161 = vmatpush1.bf16.msra.mxu0 %v141
    %162 = vmatprep.subr.bf16.mxu0 0
    %163 = vmatpush1.bf16.msra.mxu0 %v142
    %164 = vmatprep.subr.bf16.mxu0 0
    %165 = vmatpush1.bf16.msra.mxu0 0
    %166 = vmatprep.subr.bf16.mxu0 0
    %167 = vmatpush1.bf16.msra.mxu0 0
    %168 = vmatprep.subr.bf16.mxu0 0
    %169 = vmatpush1.bf16.msra.mxu0 0
    %170 = vmatprep.subr.bf16.mxu0 0
    %171 = vmatpush1.bf16.msra.mxu0 0
    %172 = vmatprep.subr.bf16.mxu0 0
    %173 = vmatpush1.bf16.msra.mxu0 0
    %174 = vmatprep.subr.bf16.mxu0 0
    %175 = vmatpush1.bf16.msra.mxu0 0
    %176 = vmatprep.subr.bf16.mxu0 0
    %177 = vmatpush1.bf16.msra.mxu0 0
    %178 = vmatprep.subr.bf16.mxu0 0
    %179 = vmatpush1.bf16.msra.mxu0 0
    %180 = vmatprep.subr.bf16.mxu0 0
    %181 = vmatpush1.bf16.msra.mxu0 0
    %182 = vmatprep.subr.bf16.mxu0 0
    %183 = vmatpush1.bf16.msra.mxu0 0
    %184 = vmatprep.subr.bf16.mxu0 0
    %185 = vmatpush1.bf16.msra.mxu0 0
    %186 = vmatprep.subr.bf16.mxu0 0
    %187 = vmatpush1.bf16.msra.mxu0 0
    %188 = vmatprep.subr.bf16.mxu0 0
    %189 = vmatpush1.bf16.msra.mxu0 0
    %190 = vmatprep.subr.bf16.mxu0 0
    %191 = vmatpush1.bf16.msra.mxu0 0
    %192 = vmatprep.mubr.bf16.mxu0 0
    %193 = vmatmul.mubr.bf16.gmra.mrb[0].mxu0 %v155
    %v194 = vpop.f32.mrb[0].mxu0
    %v195 = vadd.f32 0.0, %v194
    %v196 = vpop.f32.mrb[0].mxu0
    %v197 = vpop.f32.mrb[0].mxu0
    %v198 = vadd.f32 0.0, %v197
    %v199 = vpop.f32.mrb[0].mxu0
    %200 = vmatprep.mubr.bf16.mxu0 0
    %201 = vmatmul.mubr.bf16.gmra.mrb[0].mxu0 %v158
    %v202 = vpop.f32.mrb[0].mxu0
    %v203 = vadd.f32 0.0, %v202
    %v204 = vpop.f32.mrb[0].mxu0
    %v205 = vpop.f32.mrb[0].mxu0
    %v206 = vadd.f32 0.0, %v205
    %v207 = vpop.f32.mrb[0].mxu0
    %208 = vdwg.mxu0
    %v213 = vunpack.c.l.b16 %v114
    %v214 = vunpack.c.l.b16 %v115
    %v215 = vunpack.c.l.b16 %v116
    %v216 = vunpack.c.l.b16 %v117
    %v217 = vpack.c.b16 %v214, %v213
    %v218 = vpack.c.b16 %v216, %v215
    %v220 = vsel %vm153, %v217, 0
    %v223 = vsel %vm153, %v218, 0
    %225 = vmatprep.subr.bf16.mxu0 0
    %226 = vmatpush1.bf16.msra.mxu0 %v118
    %227 = vmatprep.subr.bf16.mxu0 0
    %228 = vmatpush1.bf16.msra.mxu0 %v119
    %229 = vmatprep.subr.bf16.mxu0 0
    %230 = vmatpush1.bf16.msra.mxu0 0
    %231 = vmatprep.subr.bf16.mxu0 0
    %232 = vmatpush1.bf16.msra.mxu0 0
    %233 = vmatprep.subr.bf16.mxu0 0
    %234 = vmatpush1.bf16.msra.mxu0 0
    %235 = vmatprep.subr.bf16.mxu0 0
    %236 = vmatpush1.bf16.msra.mxu0 0
    %237 = vmatprep.subr.bf16.mxu0 0
    %238 = vmatpush1.bf16.msra.mxu0 0
    %239 = vmatprep.subr.bf16.mxu0 0
    %240 = vmatpush1.bf16.msra.mxu0 0
    %241 = vmatprep.subr.bf16.mxu0 0
    %242 = vmatpush1.bf16.msra.mxu0 0
    %243 = vmatprep.subr.bf16.mxu0 0
    %244 = vmatpush1.bf16.msra.mxu0 0
    %245 = vmatprep.subr.bf16.mxu0 0
    %246 = vmatpush1.bf16.msra.mxu0 0
    %247 = vmatprep.subr.bf16.mxu0 0
    %248 = vmatpush1.bf16.msra.mxu0 0
    %249 = vmatprep.subr.bf16.mxu0 0
    %250 = vmatpush1.bf16.msra.mxu0 0
    %251 = vmatprep.subr.bf16.mxu0 0
    %252 = vmatpush1.bf16.msra.mxu0 0
    %253 = vmatprep.subr.bf16.mxu0 0
    %254 = vmatpush1.bf16.msra.mxu0 0
    %255 = vmatprep.subr.bf16.mxu0 0
    %256 = vmatpush1.bf16.msra.mxu0 0
    %257 = vmatprep.mubr.bf16.mxu0 0
    %258 = vmatmul.mubr.bf16.gmra.mrb[0].mxu0 %v220
    %v259 = vpop.f32.mrb[0].mxu0
    %v260 = vadd.f32 %v195, %v259
    %v261 = vpop.f32.mrb[0].mxu0
    %v262 = vpop.f32.mrb[0].mxu0
    %v263 = vadd.f32 %v198, %v262
    %v264 = vpop.f32.mrb[0].mxu0
    %265 = vmatprep.mubr.bf16.mxu0 0
    %266 = vmatmul.mubr.bf16.gmra.mrb[0].mxu0 %v223
    %v267 = vpop.f32.mrb[0].mxu0
    %v268 = vadd.f32 %v203, %v267
    %v269 = vpop.f32.mrb[0].mxu0
    %v270 = vpop.f32.mrb[0].mxu0
    %v271 = vadd.f32 %v206, %v270
    %v272 = vpop.f32.mrb[0].mxu0
    %273 = vdwg.mxu0
    %s274 = scalar_lea.vmem [#allocation2], 32
    %v275 = vld [vmem:[%s274] sm:$0xf]
    %v276 = vld [vmem:[%s274 + $0x4] sm:$0xf]
    %v277 = vld [vmem:[%s274 + $0x8] sm:$0xf]
    %v278 = vld [vmem:[%s274 + $0xc] sm:$0xf]
    %v279 = vpack.c.bf16 %v30, %v29
    %v280 = vpack.c.bf16 %v32, %v31
    %v285 = vunpack.c.l.b16 %v275
    %v286 = vunpack.c.l.b16 %v276
    %v287 = vunpack.c.l.b16 %v277
    %v288 = vunpack.c.l.b16 %v278
    %v289 = vpack.c.b16 %v286, %v285
    %v290 = vpack.c.b16 %v288, %v287
    %v292 = vsel %vm153, %v289, 0
    %v295 = vsel %vm153, %v290, 0
    %297 = vmatprep.subr.bf16.mxu0 0
    %298 = vmatpush1.bf16.msra.mxu0 %v279
    %299 = vmatprep.subr.bf16.mxu0 0
    %300 = vmatpush1.bf16.msra.mxu0 %v280
    %301 = vmatprep.subr.bf16.mxu0 0
    %302 = vmatpush1.bf16.msra.mxu0 0
    %303 = vmatprep.subr.bf16.mxu0 0
    %304 = vmatpush1.bf16.msra.mxu0 0
    %305 = vmatprep.subr.bf16.mxu0 0
    %306 = vmatpush1.bf16.msra.mxu0 0
    %307 = vmatprep.subr.bf16.mxu0 0
    %308 = vmatpush1.bf16.msra.mxu0 0
    %309 = vmatprep.subr.bf16.mxu0 0
    %310 = vmatpush1.bf16.msra.mxu0 0
    %311 = vmatprep.subr.bf16.mxu0 0
    %312 = vmatpush1.bf16.msra.mxu0 0
    %313 = vmatprep.subr.bf16.mxu0 0
    %314 = vmatpush1.bf16.msra.mxu0 0
    %315 = vmatprep.subr.bf16.mxu0 0
    %316 = vmatpush1.bf16.msra.mxu0 0
    %317 = vmatprep.subr.bf16.mxu0 0
    %318 = vmatpush1.bf16.msra.mxu0 0
    %319 = vmatprep.subr.bf16.mxu0 0
    %320 = vmatpush1.bf16.msra.mxu0 0
    %321 = vmatprep.subr.bf16.mxu0 0
    %322 = vmatpush1.bf16.msra.mxu0 0
    %323 = vmatprep.subr.bf16.mxu0 0
    %324 = vmatpush1.bf16.msra.mxu0 0
    %325 = vmatprep.subr.bf16.mxu0 0
    %326 = vmatpush1.bf16.msra.mxu0 0
    %327 = vmatprep.subr.bf16.mxu0 0
    %328 = vmatpush1.bf16.msra.mxu0 0
    %329 = vmatprep.mubr.bf16.mxu0 0
    %330 = vmatmul.mubr.bf16.gmra.mrb[0].mxu0 %v292
    %v331 = vpop.f32.mrb[0].mxu0
    %v332 = vadd.f32 0.0, %v331
    %v333 = vpop.f32.mrb[0].mxu0
    %v334 = vpop.f32.mrb[0].mxu0
    %v335 = vadd.f32 0.0, %v334
    %v336 = vpop.f32.mrb[0].mxu0
    %337 = vmatprep.mubr.bf16.mxu0 0
    %338 = vmatmul.mubr.bf16.gmra.mrb[0].mxu0 %v295
    %v339 = vpop.f32.mrb[0].mxu0
    %v340 = vadd.f32 0.0, %v339
    %v341 = vpop.f32.mrb[0].mxu0
    %v342 = vpop.f32.mrb[0].mxu0
    %v343 = vadd.f32 0.0, %v342
    %v344 = vpop.f32.mrb[0].mxu0
    %345 = vdwg.mxu0
    %v346 = vadd.f32 %v260, %v332
    %v347 = vadd.f32 %v263, %v335
    %v348 = vadd.f32 %v268, %v340
    %v349 = vadd.f32 %v271, %v343
    %351 = vset.pattern.permute.xlu0 0
    %352 = vperm.xlu0 %351, %v50
    %v353 = vpop.permute.xlu0 %352
    %356 = vset.pattern.permute.xlu0 0
    %357 = vperm.xlu0 %356, %v51
    %v358 = vpop.permute.xlu0 %357
    %361 = vset.pattern.permute.xlu0 0
    %362 = vperm.xlu0 %361, %v52
    %v363 = vpop.permute.xlu0 %362
    %366 = vset.pattern.permute.xlu0 0
    %367 = vperm.xlu0 %366, %v53
    %v368 = vpop.permute.xlu0 %367
    %v370 = vadd.f32 %v346, %v353
    %v371 = vadd.f32 %v347, %v358
    %v372 = vadd.f32 %v348, %v363
    %v373 = vadd.f32 %v349, %v368
    %v374 = vmax.f32 %v370, 0.0
    %v375 = vmax.f32 %v371, 0.0
    %v376 = vmax.f32 %v372, 0.0
    %v377 = vmax.f32 %v373, 0.0
    %v378 = vadd.f32 %v374, %v29
    %v379 = vadd.f32 %v375, %v30
    %v380 = vadd.f32 %v376, %v31
    %v381 = vadd.f32 %v377, %v32
    %v382 = vmax.f32 %v378, 0.0
    %v383 = vmax.f32 %v379, 0.0
    %v384 = vmax.f32 %v380, 0.0
    %v385 = vmax.f32 %v381, 0.0
    %386 = vrot.lane.b32.xlu0 %v382, 16
    %v387 = vpop.permute.xlu0 %386
    %v388 = vsel %vm69, %v387, %v382
    %389 = vrot.lane.b32.xlu0 %v383, 16
    %v390 = vpop.permute.xlu0 %389
    %v391 = vsel %vm69, %v390, %v383
    %392 = vrot.lane.b32.xlu0 %v384, 16
    %v393 = vpop.permute.xlu0 %392
    %v394 = vsel %vm69, %v393, %v384
    %395 = vrot.lane.b32.xlu0 %v385, 16
    %v396 = vpop.permute.xlu0 %395
    %v397 = vsel %vm69, %v396, %v385
    %398 = vrot.lane.b32.xlu0 %v388, 16
    %v399 = vpop.permute.xlu0 %398
    %400 = vrot.lane.b32.xlu0 %v391, 16
    %v401 = vpop.permute.xlu0 %400
    %402 = vrot.lane.b32.xlu0 %v394, 16
    %v403 = vpop.permute.xlu0 %402
    %404 = vrot.lane.b32.xlu0 %v397, 16
    %v405 = vpop.permute.xlu0 %404
    %v406 = vsel %vm69, %v399, %v382
    %v407 = vsel %vm69, %v401, %v383
    %v408 = vsel %vm69, %v403, %v384
    %v409 = vsel %vm69, %v405, %v385
    %414 = vrot.lane.b32.xlu0 %v406, 116
    %v415 = vpop.permute.xlu0 %414
    %416 = vrot.lane.b32.xlu0 %v407, 116
    %v417 = vpop.permute.xlu0 %416
    %418 = vrot.lane.b32.xlu0 %v408, 116
    %v419 = vpop.permute.xlu0 %418
    %420 = vrot.lane.b32.xlu0 %v409, 116
    %v421 = vpop.permute.xlu0 %420
    %v426 = vsel %vm49, %v415, 0.0
    %v427 = vsel %vm49, %v417, 0.0
    %v428 = vsel %vm49, %v419, 0.0
    %v429 = vsel %vm49, %v421, 0.0
    %s430 = scalar_lea.vmem [#allocation2], 48
    %v431 = vld [vmem:[%s430] sm:$0xf]
    %v432 = vld [vmem:[%s430 + $0x4] sm:$0xf]
    %v433 = vld [vmem:[%s430 + $0x8] sm:$0xf]
    %v434 = vld [vmem:[%s430 + $0xc] sm:$0xf]
    %v435 = vpack.c.bf16 %v427, %v426
    %v436 = vpack.c.bf16 %v429, %v428
    %437 = vrot.lane.b32.xlu0 %v406, 114
    %v438 = vpop.permute.xlu0 %437
    %439 = vrot.lane.b32.xlu0 %v407, 114
    %v440 = vpop.permute.xlu0 %439
    %441 = vrot.lane.b32.xlu0 %v408, 114
    %v442 = vpop.permute.xlu0 %441
    %443 = vrot.lane.b32.xlu0 %v409, 114
    %v444 = vpop.permute.xlu0 %443
    %v449 = vsel %vm48, %v438, 0.0
    %v450 = vsel %vm48, %v440, 0.0
    %v451 = vsel %vm48, %v442, 0.0
    %v452 = vsel %vm48, %v444, 0.0
    %s453 = scalar_lea.vmem [#allocation2], 64
    %v454 = vld [vmem:[%s453] sm:$0xf]
    %v455 = vld [vmem:[%s453 + $0x4] sm:$0xf]
    %v456 = vld [vmem:[%s453 + $0x8] sm:$0xf]
    %v457 = vld [vmem:[%s453 + $0xc] sm:$0xf]
    %v458 = vpack.c.bf16 %v450, %v449
    %v459 = vpack.c.bf16 %v452, %v451
    %v464 = vunpack.c.l.b16 %v454
    %v465 = vunpack.c.l.b16 %v455
    %v466 = vunpack.c.l.b16 %v456
    %v467 = vunpack.c.l.b16 %v457
    %v468 = vpack.c.b16 %v465, %v464
    %v469 = vpack.c.b16 %v467, %v466
    %v471 = vsel %vm153, %v468, 0
    %v474 = vsel %vm153, %v469, 0
    %476 = vmatprep.subr.bf16.mxu0 0
    %477 = vmatpush1.bf16.msra.mxu0 %v458
    %478 = vmatprep.subr.bf16.mxu0 0
    %479 = vmatpush1.bf16.msra.mxu0 %v459
    %480 = vmatprep.subr.bf16.mxu0 0
    %481 = vmatpush1.bf16.msra.mxu0 0
    %482 = vmatprep.subr.bf16.mxu0 0
    %483 = vmatpush1.bf16.msra.mxu0 0
    %484 = vmatprep.subr.bf16.mxu0 0
    %485 = vmatpush1.bf16.msra.mxu0 0
    %486 = vmatprep.subr.bf16.mxu0 0
    %487 = vmatpush1.bf16.msra.mxu0 0
    %488 = vmatprep.subr.bf16.mxu0 0
    %489 = vmatpush1.bf16.msra.mxu0 0
    %490 = vmatprep.subr.bf16.mxu0 0
    %491 = vmatpush1.bf16.msra.mxu0 0
    %492 = vmatprep.subr.bf16.mxu0 0
    %493 = vmatpush1.bf16.msra.mxu0 0
    %494 = vmatprep.subr.bf16.mxu0 0
    %495 = vmatpush1.bf16.msra.mxu0 0
    %496 = vmatprep.subr.bf16.mxu0 0
    %497 = vmatpush1.bf16.msra.mxu0 0
    %498 = vmatprep.subr.bf16.mxu0 0
    %499 = vmatpush1.bf16.msra.mxu0 0
    %500 = vmatprep.subr.bf16.mxu0 0
    %501 = vmatpush1.bf16.msra.mxu0 0
    %502 = vmatprep.subr.bf16.mxu0 0
    %503 = vmatpush1.bf16.msra.mxu0 0
    %504 = vmatprep.subr.bf16.mxu0 0
    %505 = vmatpush1.bf16.msra.mxu0 0
    %506 = vmatprep.subr.bf16.mxu0 0
    %507 = vmatpush1.bf16.msra.mxu0 0
    %508 = vmatprep.mubr.bf16.mxu0 0
    %509 = vmatmul.mubr.bf16.gmra.mrb[0].mxu0 %v471
    %v510 = vpop.f32.mrb[0].mxu0
    %v511 = vadd.f32 0.0, %v510
    %v512 = vpop.f32.mrb[0].mxu0
    %v513 = vpop.f32.mrb[0].mxu0
    %v514 = vadd.f32 0.0, %v513
    %v515 = vpop.f32.mrb[0].mxu0
    %516 = vmatprep.mubr.bf16.mxu0 0
    %517 = vmatmul.mubr.bf16.gmra.mrb[0].mxu0 %v474
    %v518 = vpop.f32.mrb[0].mxu0
    %v519 = vadd.f32 0.0, %v518
    %v520 = vpop.f32.mrb[0].mxu0
    %v521 = vpop.f32.mrb[0].mxu0
    %v522 = vadd.f32 0.0, %v521
    %v523 = vpop.f32.mrb[0].mxu0
    %524 = vdwg.mxu0
    %v529 = vunpack.c.l.b16 %v431
    %v530 = vunpack.c.l.b16 %v432
    %v531 = vunpack.c.l.b16 %v433
    %v532 = vunpack.c.l.b16 %v434
    %v533 = vpack.c.b16 %v530, %v529
    %v534 = vpack.c.b16 %v532, %v531
    %v536 = vsel %vm153, %v533, 0
    %v539 = vsel %vm153, %v534, 0
    %541 = vmatprep.subr.bf16.mxu0 0
    %542 = vmatpush1.bf16.msra.mxu0 %v435
    %543 = vmatprep.subr.bf16.mxu0 0
    %544 = vmatpush1.bf16.msra.mxu0 %v436
    %545 = vmatprep.subr.bf16.mxu0 0
    %546 = vmatpush1.bf16.msra.mxu0 0
    %547 = vmatprep.subr.bf16.mxu0 0
    %548 = vmatpush1.bf16.msra.mxu0 0
    %549 = vmatprep.subr.bf16.mxu0 0
    %550 = vmatpush1.bf16.msra.mxu0 0
    %551 = vmatprep.subr.bf16.mxu0 0
    %552 = vmatpush1.bf16.msra.mxu0 0
    %553 = vmatprep.subr.bf16.mxu0 0
    %554 = vmatpush1.bf16.msra.mxu0 0
    %555 = vmatprep.subr.bf16.mxu0 0
    %556 = vmatpush1.bf16.msra.mxu0 0
    %557 = vmatprep.subr.bf16.mxu0 0
    %558 = vmatpush1.bf16.msra.mxu0 0
    %559 = vmatprep.subr.bf16.mxu0 0
    %560 = vmatpush1.bf16.msra.mxu0 0
    %561 = vmatprep.subr.bf16.mxu0 0
    %562 = vmatpush1.bf16.msra.mxu0 0
    %563 = vmatprep.subr.bf16.mxu0 0
    %564 = vmatpush1.bf16.msra.mxu0 0
    %565 = vmatprep.subr.bf16.mxu0 0
    %566 = vmatpush1.bf16.msra.mxu0 0
    %567 = vmatprep.subr.bf16.mxu0 0
    %568 = vmatpush1.bf16.msra.mxu0 0
    %569 = vmatprep.subr.bf16.mxu0 0
    %570 = vmatpush1.bf16.msra.mxu0 0
    %571 = vmatprep.subr.bf16.mxu0 0
    %572 = vmatpush1.bf16.msra.mxu0 0
    %573 = vmatprep.mubr.bf16.mxu0 0
    %574 = vmatmul.mubr.bf16.gmra.mrb[0].mxu0 %v536
    %v575 = vpop.f32.mrb[0].mxu0
    %v576 = vadd.f32 %v511, %v575
    %v577 = vpop.f32.mrb[0].mxu0
    %v578 = vpop.f32.mrb[0].mxu0
    %v579 = vadd.f32 %v514, %v578
    %v580 = vpop.f32.mrb[0].mxu0
    %581 = vmatprep.mubr.bf16.mxu0 0
    %582 = vmatmul.mubr.bf16.gmra.mrb[0].mxu0 %v539
    %v583 = vpop.f32.mrb[0].mxu0
    %v584 = vadd.f32 %v519, %v583
    %v585 = vpop.f32.mrb[0].mxu0
    %v586 = vpop.f32.mrb[0].mxu0
    %v587 = vadd.f32 %v522, %v586
    %v588 = vpop.f32.mrb[0].mxu0
    %589 = vdwg.mxu0
    %s590 = scalar_lea.vmem [#allocation2], 80
    %v591 = vld [vmem:[%s590] sm:$0xf]
    %v592 = vld [vmem:[%s590 + $0x4] sm:$0xf]
    %v593 = vld [vmem:[%s590 + $0x8] sm:$0xf]
    %v594 = vld [vmem:[%s590 + $0xc] sm:$0xf]
    %v595 = vpack.c.bf16 %v383, %v382
    %v596 = vpack.c.bf16 %v385, %v384
    %v601 = vunpack.c.l.b16 %v591
    %v602 = vunpack.c.l.b16 %v592
    %v603 = vunpack.c.l.b16 %v593
    %v604 = vunpack.c.l.b16 %v594
    %v605 = vpack.c.b16 %v602, %v601
    %v606 = vpack.c.b16 %v604, %v603
    %v608 = vsel %vm153, %v605, 0
    %v611 = vsel %vm153, %v606, 0
    %613 = vmatprep.subr.bf16.mxu0 0
    %614 = vmatpush1.bf16.msra.mxu0 %v595
    %615 = vmatprep.subr.bf16.mxu0 0
    %616 = vmatpush1.bf16.msra.mxu0 %v596
    %617 = vmatprep.subr.bf16.mxu0 0
    %618 = vmatpush1.bf16.msra.mxu0 0
    %619 = vmatprep.subr.bf16.mxu0 0
    %620 = vmatpush1.bf16.msra.mxu0 0
    %621 = vmatprep.subr.bf16.mxu0 0
    %622 = vmatpush1.bf16.msra.mxu0 0
    %623 = vmatprep.subr.bf16.mxu0 0
    %624 = vmatpush1.bf16.msra.mxu0 0
    %625 = vmatprep.subr.bf16.mxu0 0
    %626 = vmatpush1.bf16.msra.mxu0 0
    %627 = vmatprep.subr.bf16.mxu0 0
    %628 = vmatpush1.bf16.msra.mxu0 0
    %629 = vmatprep.subr.bf16.mxu0 0
    %630 = vmatpush1.bf16.msra.mxu0 0
    %631 = vmatprep.subr.bf16.mxu0 0
    %632 = vmatpush1.bf16.msra.mxu0 0
    %633 = vmatprep.subr.bf16.mxu0 0
    %634 = vmatpush1.bf16.msra.mxu0 0
    %635 = vmatprep.subr.bf16.mxu0 0
    %636 = vmatpush1.bf16.msra.mxu0 0
    %637 = vmatprep.subr.bf16.mxu0 0
    %638 = vmatpush1.bf16.msra.mxu0 0
    %639 = vmatprep.subr.bf16.mxu0 0
    %640 = vmatpush1.bf16.msra.mxu0 0
    %641 = vmatprep.subr.bf16.mxu0 0
    %642 = vmatpush1.bf16.msra.mxu0 0
    %643 = vmatprep.subr.bf16.mxu0 0
    %644 = vmatpush1.bf16.msra.mxu0 0
    %645 = vmatprep.mubr.bf16.mxu0 0
    %646 = vmatmul.mubr.bf16.gmra.mrb[0].mxu0 %v608
    %v647 = vpop.f32.mrb[0].mxu0
    %v648 = vadd.f32 0.0, %v647
    %v649 = vpop.f32.mrb[0].mxu0
    %v650 = vpop.f32.mrb[0].mxu0
    %v651 = vadd.f32 0.0, %v650
    %v652 = vpop.f32.mrb[0].mxu0
    %653 = vmatprep.mubr.bf16.mxu0 0
    %654 = vmatmul.mubr.bf16.gmra.mrb[0].mxu0 %v611
    %v655 = vpop.f32.mrb[0].mxu0
    %v656 = vadd.f32 0.0, %v655
    %v657 = vpop.f32.mrb[0].mxu0
    %v658 = vpop.f32.mrb[0].mxu0
    %v659 = vadd.f32 0.0, %v658
    %v660 = vpop.f32.mrb[0].mxu0
    %661 = vdwg.mxu0
    %v662 = vadd.f32 %v576, %v648
    %v663 = vadd.f32 %v579, %v651
    %v664 = vadd.f32 %v584, %v656
    %v665 = vadd.f32 %v587, %v659
    %667 = vset.pattern.permute.xlu0 0
    %668 = vperm.xlu0 %667, %v55
    %v669 = vpop.permute.xlu0 %668
    %672 = vset.pattern.permute.xlu0 0
    %673 = vperm.xlu0 %672, %v56
    %v674 = vpop.permute.xlu0 %673
    %677 = vset.pattern.permute.xlu0 0
    %678 = vperm.xlu0 %677, %v57
    %v679 = vpop.permute.xlu0 %678
    %682 = vset.pattern.permute.xlu0 0
    %683 = vperm.xlu0 %682, %v58
    %v684 = vpop.permute.xlu0 %683
    %v686 = vadd.f32 %v662, %v669
    %v687 = vadd.f32 %v663, %v674
    %v688 = vadd.f32 %v664, %v679
    %v689 = vadd.f32 %v665, %v684
    %v690 = vmax.f32 %v686, 0.0
    %v691 = vmax.f32 %v687, 0.0
    %v692 = vmax.f32 %v688, 0.0
    %v693 = vmax.f32 %v689, 0.0
    %v694 = vadd.f32 %v690, %v382
    %v695 = vadd.f32 %v691, %v383
    %v696 = vadd.f32 %v692, %v384
    %v697 = vadd.f32 %v693, %v385
    %698 = vrot.lane.b32.xlu0 %v694, 16
    %v699 = vpop.permute.xlu0 %698
    %v700 = vsel %vm69, %v699, %v694
    %701 = vrot.lane.b32.xlu0 %v695, 16
    %v702 = vpop.permute.xlu0 %701
    %v703 = vsel %vm69, %v702, %v695
    %704 = vrot.lane.b32.xlu0 %v696, 16
    %v705 = vpop.permute.xlu0 %704
    %v706 = vsel %vm69, %v705, %v696
    %707 = vrot.lane.b32.xlu0 %v697, 16
    %v708 = vpop.permute.xlu0 %707
    %v709 = vsel %vm69, %v708, %v697
    %710 = vrot.lane.b32.xlu0 %v700, 16
    %v711 = vpop.permute.xlu0 %710
    %712 = vrot.lane.b32.xlu0 %v703, 16
    %v713 = vpop.permute.xlu0 %712
    %714 = vrot.lane.b32.xlu0 %v706, 16
    %v715 = vpop.permute.xlu0 %714
    %716 = vrot.lane.b32.xlu0 %v709, 16
    %v717 = vpop.permute.xlu0 %716
    %v718 = vsel %vm69, %v711, %v694
    %v719 = vsel %vm69, %v713, %v695
    %v720 = vsel %vm69, %v715, %v696
    %v721 = vsel %vm69, %v717, %v697
    %726 = vrot.lane.b32.xlu0 %v718, 116
    %v727 = vpop.permute.xlu0 %726
    %728 = vrot.lane.b32.xlu0 %v719, 116
    %v729 = vpop.permute.xlu0 %728
    %730 = vrot.lane.b32.xlu0 %v720, 116
    %v731 = vpop.permute.xlu0 %730
    %732 = vrot.lane.b32.xlu0 %v721, 116
    %v733 = vpop.permute.xlu0 %732
    %v738 = vsel %vm49, %v727, 0.0
    %v739 = vsel %vm49, %v729, 0.0
    %v740 = vsel %vm49, %v731, 0.0
    %v741 = vsel %vm49, %v733, 0.0
    %s742 = scalar_lea.vmem [#allocation2], 112
    %v743 = vld [vmem:[%s742] sm:$0xf]
    %v744 = vld [vmem:[%s742 + $0x4] sm:$0xf]
    %v745 = vld [vmem:[%s742 + $0x8] sm:$0xf]
    %v746 = vld [vmem:[%s742 + $0xc] sm:$0xf]
    %v747 = vpack.c.bf16 %v739, %v738
    %v748 = vpack.c.bf16 %v741, %v740
    %s749 = scalar_lea.vmem [#allocation2], 128
    %v750 = vld [vmem:[%s749] sm:$0xf]
    %v751 = vld [vmem:[%s749 + $0x4] sm:$0xf]
    %v752 = vld [vmem:[%s749 + $0x8] sm:$0xf]
    %v753 = vld [vmem:[%s749 + $0xc] sm:$0xf]
    %v754 = vpack.c.bf16 %v695, %v694
    %v755 = vpack.c.bf16 %v697, %v696
    %v760 = vunpack.c.l.b16 %v750
    %v761 = vunpack.c.l.b16 %v751
    %v762 = vunpack.c.l.b16 %v752
    %v763 = vunpack.c.l.b16 %v753
    %v764 = vpack.c.b16 %v761, %v760
    %v765 = vpack.c.b16 %v763, %v762
    %v767 = vsel %vm153, %v764, 0
    %v770 = vsel %vm153, %v765, 0
    %772 = vmatprep.subr.bf16.mxu0 0
    %773 = vmatpush1.bf16.msra.mxu0 %v754
    %774 = vmatprep.subr.bf16.mxu0 0
    %775 = vmatpush1.bf16.msra.mxu0 %v755
    %776 = vmatprep.subr.bf16.mxu0 0
    %777 = vmatpush1.bf16.msra.mxu0 0
    %778 = vmatprep.subr.bf16.mxu0 0
    %779 = vmatpush1.bf16.msra.mxu0 0
    %780 = vmatprep.subr.bf16.mxu0 0
    %781 = vmatpush1.bf16.msra.mxu0 0
    %782 = vmatprep.subr.bf16.mxu0 0
    %783 = vmatpush1.bf16.msra.mxu0 0
    %784 = vmatprep.subr.bf16.mxu0 0
    %785 = vmatpush1.bf16.msra.mxu0 0
    %786 = vmatprep.subr.bf16.mxu0 0
    %787 = vmatpush1.bf16.msra.mxu0 0
    %788 = vmatprep.subr.bf16.mxu0 0
    %789 = vmatpush1.bf16.msra.mxu0 0
    %790 = vmatprep.subr.bf16.mxu0 0
    %791 = vmatpush1.bf16.msra.mxu0 0
    %792 = vmatprep.subr.bf16.mxu0 0
    %793 = vmatpush1.bf16.msra.mxu0 0
    %794 = vmatprep.subr.bf16.mxu0 0
    %795 = vmatpush1.bf16.msra.mxu0 0
    %796 = vmatprep.subr.bf16.mxu0 0
    %797 = vmatpush1.bf16.msra.mxu0 0
    %798 = vmatprep.subr.bf16.mxu0 0
    %799 = vmatpush1.bf16.msra.mxu0 0
    %800 = vmatprep.subr.bf16.mxu0 0
    %801 = vmatpush1.bf16.msra.mxu0 0
    %802 = vmatprep.subr.bf16.mxu0 0
    %803 = vmatpush1.bf16.msra.mxu0 0
    %804 = vmatprep.mubr.bf16.mxu0 0
    %805 = vmatmul.mubr.bf16.gmra.mrb[0].mxu0 %v767
    %v806 = vpop.f32.mrb[0].mxu0
    %v807 = vadd.f32 0.0, %v806
    %v808 = vpop.f32.mrb[0].mxu0
    %v809 = vpop.f32.mrb[0].mxu0
    %v810 = vadd.f32 0.0, %v809
    %v811 = vpop.f32.mrb[0].mxu0
    %812 = vmatprep.mubr.bf16.mxu0 0
    %813 = vmatmul.mubr.bf16.gmra.mrb[0].mxu0 %v770
    %v814 = vpop.f32.mrb[0].mxu0
    %v815 = vadd.f32 0.0, %v814
    %v816 = vpop.f32.mrb[0].mxu0
    %v817 = vpop.f32.mrb[0].mxu0
    %v818 = vadd.f32 0.0, %v817
    %v819 = vpop.f32.mrb[0].mxu0
    %820 = vdwg.mxu0
    %v825 = vunpack.c.l.b16 %v743
    %v826 = vunpack.c.l.b16 %v744
    %v827 = vunpack.c.l.b16 %v745
    %v828 = vunpack.c.l.b16 %v746
    %v829 = vpack.c.b16 %v826, %v825
    %v830 = vpack.c.b16 %v828, %v827
    %v832 = vsel %vm153, %v829, 0
    %v835 = vsel %vm153, %v830, 0
    %837 = vmatprep.subr.bf16.mxu0 0
    %838 = vmatpush1.bf16.msra.mxu0 %v747
    %839 = vmatprep.subr.bf16.mxu0 0
    %840 = vmatpush1.bf16.msra.mxu0 %v748
    %841 = vmatprep.subr.bf16.mxu0 0
    %842 = vmatpush1.bf16.msra.mxu0 0
    %843 = vmatprep.subr.bf16.mxu0 0
    %844 = vmatpush1.bf16.msra.mxu0 0
    %845 = vmatprep.subr.bf16.mxu0 0
    %846 = vmatpush1.bf16.msra.mxu0 0
    %847 = vmatprep.subr.bf16.mxu0 0
    %848 = vmatpush1.bf16.msra.mxu0 0
    %849 = vmatprep.subr.bf16.mxu0 0
    %850 = vmatpush1.bf16.msra.mxu0 0
    %851 = vmatprep.subr.bf16.mxu0 0
    %852 = vmatpush1.bf16.msra.mxu0 0
    %853 = vmatprep.subr.bf16.mxu0 0
    %854 = vmatpush1.bf16.msra.mxu0 0
    %855 = vmatprep.subr.bf16.mxu0 0
    %856 = vmatpush1.bf16.msra.mxu0 0
    %857 = vmatprep.subr.bf16.mxu0 0
    %858 = vmatpush1.bf16.msra.mxu0 0
    %859 = vmatprep.subr.bf16.mxu0 0
    %860 = vmatpush1.bf16.msra.mxu0 0
    %861 = vmatprep.subr.bf16.mxu0 0
    %862 = vmatpush1.bf16.msra.mxu0 0
    %863 = vmatprep.subr.bf16.mxu0 0
    %864 = vmatpush1.bf16.msra.mxu0 0
    %865 = vmatprep.subr.bf16.mxu0 0
    %866 = vmatpush1.bf16.msra.mxu0 0
    %867 = vmatprep.subr.bf16.mxu0 0
    %868 = vmatpush1.bf16.msra.mxu0 0
    %869 = vmatprep.mubr.bf16.mxu0 0
    %870 = vmatmul.mubr.bf16.gmra.mrb[0].mxu0 %v832
    %v871 = vpop.f32.mrb[0].mxu0
    %v872 = vadd.f32 %v807, %v871
    %v873 = vpop.f32.mrb[0].mxu0
    %v874 = vpop.f32.mrb[0].mxu0
    %v875 = vadd.f32 %v810, %v874
    %v876 = vpop.f32.mrb[0].mxu0
    %877 = vmatprep.mubr.bf16.mxu0 0
    %878 = vmatmul.mubr.bf16.gmra.mrb[0].mxu0 %v835
    %v879 = vpop.f32.mrb[0].mxu0
    %v880 = vadd.f32 %v815, %v879
    %v881 = vpop.f32.mrb[0].mxu0
    %v882 = vpop.f32.mrb[0].mxu0
    %v883 = vadd.f32 %v818, %v882
    %v884 = vpop.f32.mrb[0].mxu0
    %885 = vdwg.mxu0
    %887 = vset.pattern.permute.xlu0 0
    %888 = vperm.xlu0 %887, %v60
    %v889 = vpop.permute.xlu0 %888
    %892 = vset.pattern.permute.xlu0 0
    %893 = vperm.xlu0 %892, %v61
    %v894 = vpop.permute.xlu0 %893
    %897 = vset.pattern.permute.xlu0 0
    %898 = vperm.xlu0 %897, %v62
    %v899 = vpop.permute.xlu0 %898
    %902 = vset.pattern.permute.xlu0 0
    %903 = vperm.xlu0 %902, %v63
    %v904 = vpop.permute.xlu0 %903
    %v906 = vadd.f32 %v872, %v889
    %v907 = vadd.f32 %v875, %v894
    %v908 = vadd.f32 %v880, %v899
    %v909 = vadd.f32 %v883, %v904
    %v910 = vmax.f32 %v906, 0.0
    %v911 = vmax.f32 %v907, 0.0
    %v912 = vmax.f32 %v908, 0.0
    %v913 = vmax.f32 %v909, 0.0
    %v914 = vadd.f32 %v910, %v694
    %v915 = vadd.f32 %v911, %v695
    %v916 = vadd.f32 %v912, %v696
    %v917 = vadd.f32 %v913, %v697
    %s918 = scalar_lea.vmem [#allocation2], 176
    %v919 = vld [vmem:[%s918] sm:$0xf]
    %v920 = vld [vmem:[%s918 + $0x4] sm:$0xf]
    %v921 = vld [vmem:[%s918 + $0x8] sm:$0xf]
    %v922 = vld [vmem:[%s918 + $0xc] sm:$0xf]
    %v923 = vpack.c.bf16 %v915, %v914
    %v924 = vpack.c.bf16 %v917, %v916
    %926 = vset.pattern.permute.xlu0 0
    %927 = vperm.xlu0 %926, %v65
    %v928 = vpop.permute.xlu0 %927
    %931 = vset.pattern.permute.xlu0 0
    %932 = vperm.xlu0 %931, %v66
    %v933 = vpop.permute.xlu0 %932
    %936 = vset.pattern.permute.xlu0 0
    %937 = vperm.xlu0 %936, %v67
    %v938 = vpop.permute.xlu0 %937
    %941 = vset.pattern.permute.xlu0 0
    %942 = vperm.xlu0 %941, %v68
    %v943 = vpop.permute.xlu0 %942
    %v949 = vunpack.c.l.b16 %v919
    %v950 = vunpack.c.l.b16 %v920
    %v951 = vunpack.c.l.b16 %v921
    %v952 = vunpack.c.l.b16 %v922
    %v953 = vpack.c.b16 %v950, %v949
    %v954 = vpack.c.b16 %v952, %v951
    %v956 = vsel %vm153, %v953, 0
    %v959 = vsel %vm153, %v954, 0
    %961 = vmatprep.subr.bf16.mxu0 0
    %962 = vmatpush1.bf16.msra.mxu0 %v923
    %963 = vmatprep.subr.bf16.mxu0 0
    %964 = vmatpush1.bf16.msra.mxu0 %v924
    %965 = vmatprep.subr.bf16.mxu0 0
    %966 = vmatpush1.bf16.msra.mxu0 0
    %967 = vmatprep.subr.bf16.mxu0 0
    %968 = vmatpush1.bf16.msra.mxu0 0
    %969 = vmatprep.subr.bf16.mxu0 0
    %970 = vmatpush1.bf16.msra.mxu0 0
    %971 = vmatprep.subr.bf16.mxu0 0
    %972 = vmatpush1.bf16.msra.mxu0 0
    %973 = vmatprep.subr.bf16.mxu0 0
    %974 = vmatpush1.bf16.msra.mxu0 0
    %975 = vmatprep.subr.bf16.mxu0 0
    %976 = vmatpush1.bf16.msra.mxu0 0
    %977 = vmatprep.subr.bf16.mxu0 0
    %978 = vmatpush1.bf16.msra.mxu0 0
    %979 = vmatprep.subr.bf16.mxu0 0
    %980 = vmatpush1.bf16.msra.mxu0 0
    %981 = vmatprep.subr.bf16.mxu0 0
    %982 = vmatpush1.bf16.msra.mxu0 0
    %983 = vmatprep.subr.bf16.mxu0 0
    %984 = vmatpush1.bf16.msra.mxu0 0
    %985 = vmatprep.subr.bf16.mxu0 0
    %986 = vmatpush1.bf16.msra.mxu0 0
    %987 = vmatprep.subr.bf16.mxu0 0
    %988 = vmatpush1.bf16.msra.mxu0 0
    %989 = vmatprep.subr.bf16.mxu0 0
    %990 = vmatpush1.bf16.msra.mxu0 0
    %991 = vmatprep.subr.bf16.mxu0 0
    %992 = vmatpush1.bf16.msra.mxu0 0
    %993 = vmatprep.mubr.bf16.mxu0 0
    %994 = vmatmul.mubr.bf16.gmra.mrb[0].mxu0 %v956
    %v995 = vpop.f32.mrb[0].mxu0
    %v996 = vadd.f32 %v928, %v995
    %v997 = vpop.f32.mrb[0].mxu0
    %v998 = vpop.f32.mrb[0].mxu0
    %v999 = vadd.f32 %v933, %v998
    %v1000 = vpop.f32.mrb[0].mxu0
    %1001 = vmatprep.mubr.bf16.mxu0 0
    %1002 = vmatmul.mubr.bf16.gmra.mrb[0].mxu0 %v959
    %v1003 = vpop.f32.mrb[0].mxu0
    %v1004 = vadd.f32 %v938, %v1003
    %v1005 = vpop.f32.mrb[0].mxu0
    %v1006 = vpop.f32.mrb[0].mxu0
    %v1007 = vadd.f32 %v943, %v1006
    %v1008 = vpop.f32.mrb[0].mxu0
    %1009 = vdwg.mxu0
    %v1010 = vmax.f32 %v996, 0.0
    %v1011 = vmax.f32 %v999, 0.0
    %v1012 = vmax.f32 %v1004, 0.0
    %v1013 = vmax.f32 %v1007, 0.0
    %v1014 = vadd.f32 %v1010, %v914
    %v1015 = vadd.f32 %v1011, %v915
    %v1016 = vadd.f32 %v1012, %v916
    %v1017 = vadd.f32 %v1013, %v917
    %1022 = vrot.lane.b32.xlu0 %v1014, 121
    %v1023 = vpop.permute.xlu0 %1022
    %1024 = vrot.lane.b32.xlu0 %v1015, 121
    %v1025 = vpop.permute.xlu0 %1024
    %1026 = vrot.lane.b32.xlu0 %v1016, 121
    %v1027 = vpop.permute.xlu0 %1026
    %1028 = vrot.lane.b32.xlu0 %v1017, 121
    %v1029 = vpop.permute.xlu0 %1028
    %vm1034 = vcmask 7168
    %1035 = vst.msk [vmem:[%s3] sm:$0xff] %vm1034, %v1023
    %1036 = vst.msk [vmem:[%s3 + $0x8] sm:$0xff] %vm1034, %v1025
    %1037 = vst.msk [vmem:[%s3 + $0x10] sm:$0xff] %vm1034, %v1027
    %1038 = vst.msk [vmem:[%s3 + $0x18] sm:$0xff] %vm1034, %v1029
    %1039 = vrot.lane.b32.xlu0 %v1014, 114
    %v1040 = vpop.permute.xlu0 %1039
    %1041 = vrot.lane.b32.xlu0 %v1015, 114
    %v1042 = vpop.permute.xlu0 %1041
    %1043 = vrot.lane.b32.xlu0 %v1016, 114
    %v1044 = vpop.permute.xlu0 %1043
    %1045 = vrot.lane.b32.xlu0 %v1017, 114
    %v1046 = vpop.permute.xlu0 %1045
    %vm1051 = vcmask 15368
    %1052 = vst.msk [vmem:[%s3] sm:$0xff] %vm1051, %v1040
    %1053 = vst.msk [vmem:[%s3 + $0x8] sm:$0xff] %vm1051, %v1042
    %1054 = vst.msk [vmem:[%s3 + $0x10] sm:$0xff] %vm1051, %v1044
    %1055 = vst.msk [vmem:[%s3 + $0x18] sm:$0xff] %vm1051, %v1046
    // Predicated region
    $region18: #{tpu_custom_call.1} parent=1 // pred_check
      _
    $region19: #{tpu_custom_call.1} parent=1 // pred_check_branch
      %1057 = sbr.rel (0) target = $region21
    $region20: #{tpu_custom_call.1} parent=1 // pred_region
      _
    $region21: #{tpu_custom_call.1} parent=1 // pred_fallthru
      _
    // Predicated region
    $region22: #{tpu_custom_call.1} parent=1 // pred_check
      _
    $region23: #{tpu_custom_call.1} parent=1 // pred_check_branch
      %1059 = sbr.rel (0) target = $region25
    $region24: #{tpu_custom_call.1} parent=1 // pred_region
      _
    $region25: #{tpu_custom_call.1} parent=1 // pred_fallthru
      _
    %1060 = vsyncpa [#allocation3], 1

</llo_original>
